<compile_context>
chip_gen: v6e
topology: v6e:2x2x1
jax: 0.10.0
libtpu: 0.0.40
codegen_flags: <defaults>
</compile_context>

<pallas_src>
import functools

import jax
import jax.numpy as jnp
from jax.experimental import pallas as pl
from jax.experimental.pallas import tpu as pltpu

EPS = 1e-5      # AdaptiveInstanceNorm2d eps (only used by the literal reference)
LANES = 128     # pad feature axes to one full lane register -> unmasked vst
F_IN = 32       # decoder input / output feature width
F_MID = 64      # AdaIN channel count (fc2 output width)

# Row offsets inside the packed weight slab (all multiples of 8 sublanes).
_W3_ROW = 0      # rows   0:128 -> fused fc3 weight, zero-padded to [128, 128]
_W4_ROW = 128    # rows 128:256 -> fused fc4 weight (col 1 masked), [128, 128]
_B3_ROW = 256    # row  256     -> fused fc3 bias, zero-padded to 128 lanes
_B4_ROW = 264    # row  264     -> fused fc4 bias (col 1 masked), 128 lanes
_SLAB_ROWS = 272


def decoder_kernel(adain_b_ref, x_ref, w_ref, o_ref):
    # AdaIN over spatial extent 1: the normalized value is exactly 0, so the
    # AdaIN output is the per-(sample, channel) bias.  fc1/fc2/adain_weight are
    # provably dead and were eliminated (see decoder_reference for the literal
    # path that this is asserted against).
    h = adain_b_ref[...]                                           # [TB, 128]

    # fc3: two bias-only Linears fused host-side into one matmul, then ReLU.
    h = jnp.dot(h, w_ref[_W3_ROW:_W3_ROW + LANES, :],
                preferred_element_type=jnp.float32)
    h = jnp.maximum(h + w_ref[_B3_ROW:_B3_ROW + 1, :], 0.0)

    # fc4 (fused) with the column-1 zero mask folded into W4 / b4.
    h = jnp.dot(h, w_ref[_W4_ROW:_W4_ROW + LANES, :],
                preferred_element_type=jnp.float32)
    h = h + w_ref[_B4_ROW:_B4_ROW + 1, :]

    # Residual add of the decoder input (lane-padded with zeros).
    o_ref[...] = h + x_ref[...]


@functools.partial(jax.jit, static_argnames=("block_b",))
def decoder_forward(x, adain_bias, w_slab, *, block_b=128):
    """x: [B, 32] f32, adain_bias: [B, 64] f32, w_slab: [272, 128] f32."""
    B = x.shape[0]
    nb = pl.cdiv(B, block_b)
    bp = nb * block_b

    # Lane-pad to 128 and sublane-pad the batch once, in the wrapper.
    x_p = jnp.zeros((bp, LANES), jnp.float32).at[:B, :F_IN].set(x)
    a_p = jnp.zeros((bp, LANES), jnp.float32).at[:B, :F_MID].set(adain_bias)

    flops = 2 * (2 * bp * LANES * LANES)                 # two 128-wide matmuls
    bytes_accessed = 4 * (x_p.size + a_p.size + w_slab.size + bp * LANES)

    out = pl.pallas_call(
        decoder_kernel,
        out_shape=jax.ShapeDtypeStruct((bp, LANES), jnp.float32),
        grid_spec=pltpu.PrefetchScalarGridSpec(
            num_scalar_prefetch=0,
            grid=(nb,),
            in_specs=[
                pl.BlockSpec((block_b, LANES), lambda i: (i, 0)),      # adain bias
                pl.BlockSpec((block_b, LANES), lambda i: (i, 0)),      # residual x
                pl.BlockSpec((_SLAB_ROWS, LANES), lambda i: (0, 0)),   # weights (resident)
            ],
            out_specs=pl.BlockSpec((block_b, LANES), lambda i: (i, 0)),
        ),
        compiler_params=pltpu.CompilerParams(
            dimension_semantics=("parallel",)),          # v7x: split batch over both TCs
        cost_estimate=pl.CostEstimate(
            flops=flops, transcendentals=0, bytes_accessed=bytes_accessed),
    )(a_p, x_p, w_slab)
    return out[:B, :F_IN]


def fuse_decoder_params(p):
    """Host-side: fuse each bias-only 2-layer MLP into one Linear, fold the
    column-1 zero mask into fc4, pack everything into one (8,128)-aligned slab."""
    w3 = p["w3a"] @ p["w3b"]                      # [64, 32]
    b3 = p["b3a"] @ p["w3b"] + p["b3b"]           # [1, 32]
    w4 = p["w4a"] @ p["w4b"]                      # [32, 32]
    b4 = p["b4a"] @ p["w4b"] + p["b4b"]           # [1, 32]
    # masked_fill_(zero_mask, 0) zeroes output feature 1 -> fold into fc4.
    w4 = w4.at[:, 1].set(0.0)
    b4 = b4.at[:, 1].set(0.0)

    slab = jnp.zeros((_SLAB_ROWS, LANES), jnp.float32)
    slab = slab.at[_W3_ROW:_W3_ROW + F_MID, :F_IN].set(w3)
    slab = slab.at[_W4_ROW:_W4_ROW + F_IN, :F_IN].set(w4)
    slab = slab.at[_B3_ROW, :F_IN].set(b3[0])
    slab = slab.at[_B4_ROW, :F_IN].set(b4[0])
    return slab


def make_params(key, batch):
    """Synthetic per-layer parameters in PyTorch layout (weights stored
    [in, out] so y = x @ W + b).  Biases are made non-zero here purely to
    exercise the bias-fusion path (the real module zero-inits them)."""
    ks = jax.random.split(key, 20)

    def lin(kw, kb, fan_in, fan_out):
        w = (2.0 / fan_in) ** 0.5 * jax.random.normal(kw, (fan_in, fan_out), jnp.float32)
        b = 0.01 * jax.random.normal(kb, (1, fan_out), jnp.float32)
        return w, b

    p = {}
    p["w1a"], p["b1a"] = lin(ks[0], ks[10], 32, 32)   # fc1 (dead w.r.t. output)
    p["w1b"], p["b1b"] = lin(ks[1], ks[11], 32, 32)
    p["w2a"], p["b2a"] = lin(ks[2], ks[12], 32, 64)   # fc2 (dead w.r.t. output)
    p["w2b"], p["b2b"] = lin(ks[3], ks[13], 64, 64)
    p["w3a"], p["b3a"] = lin(ks[4], ks[14], 64, 32)   # fc3
    p["w3b"], p["b3b"] = lin(ks[5], ks[15], 32, 32)
    p["w4a"], p["b4a"] = lin(ks[6], ks[16], 32, 32)   # fc4
    p["w4b"], p["b4b"] = lin(ks[7], ks[17], 32, 32)
    # Externally-assigned AdaIN params (define_G.assign_adain_params), [B, 64].
    p["adain_w"] = 1.0 + 0.1 * jax.random.normal(ks[8], (batch, 64), jnp.float32)
    p["adain_b"] = 0.1 * jax.random.normal(ks[9], (batch, 64), jnp.float32)
    return p


def decoder_reference(x, p):
    """Literal layer-by-layer PyTorch forward (fc1, fc2, degenerate AdaIN,
    fc3, fc4, masked_fill, residual) in pure JAX — validates the DCE/fusion."""
    h = jnp.maximum((x @ p["w1a"] + p["b1a"]) @ p["w1b"] + p["b1b"], 0.0)
    h = (h @ p["w2a"] + p["b2a"]) @ p["w2b"] + p["b2b"]
    # AdaIN on x.view(B, 64, 1): instance norm over a single spatial element.
    mean = h
    var = jnp.zeros_like(h)
    h = p["adain_w"] * (h - mean) * jax.lax.rsqrt(var + EPS) + p["adain_b"]
    h = jnp.maximum((h @ p["w3a"] + p["b3a"]) @ p["w3b"] + p["b3b"], 0.0)
    h = (h @ p["w4a"] + p["b4a"]) @ p["w4b"] + p["b4b"]
    h = h.at[:, 1].set(0.0)
    return h + x


if __name__ == "__main__":
    key = jax.random.PRNGKey(0)
    k_x, k_p, k_x2, k_p2 = jax.random.split(key, 4)

    # Small shape consistent with the module's [B, 32] feature layout.
    B = 8
    x = jax.random.normal(k_x, (B, F_IN), jnp.float32)
    params = make_params(k_p, B)
    w_slab = fuse_decoder_params(params)

    out = jax.block_until_ready(decoder_forward(x, params["adain_b"], w_slab))
    ref = decoder_reference(x, params)
    assert out.shape == (B, F_IN)
    # Fused weights reassociate f32 rounding vs. the literal reference.
    assert jnp.allclose(out, ref, atol=1e-3, rtol=1e-3), "mismatch vs reference (B=8)"

    # Larger batch: exercises multiple grid tiles with VMEM-resident weights
    # (and both TensorCores on v7x via the "parallel" batch axis).
    B2 = 256
    x2 = jax.random.normal(k_x2, (B2, F_IN), jnp.float32)
    params2 = make_params(k_p2, B2)
    w_slab2 = fuse_decoder_params(params2)
    out2 = jax.block_until_ready(decoder_forward(x2, params2["adain_b"], w_slab2))
    ref2 = decoder_reference(x2, params2)
    assert out2.shape == (B2, F_IN)
    assert jnp.allclose(out2, ref2, atol=1e-3, rtol=1e-3), "mismatch vs reference (B=256)"

    print("KERNEL_OK")
</pallas_src>

<mosaic_0001>
module attributes {stable_mosaic.version = 11 : i64} {
  func.func @decoder_kernel(%arg0: i32, %arg1: memref<128x128xf32, #tpu.memory_space<vmem>>, %arg2: memref<128x128xf32, #tpu.memory_space<vmem>>, %arg3: memref<272x128xf32, #tpu.memory_space<vmem>>, %arg4: memref<128x128xf32, #tpu.memory_space<vmem>>) attributes {dimension_semantics = [#tpu.dimension_semantics<parallel>], iteration_bounds = array<i64: 1>, scalar_prefetch = 0 : i64, scratch_operands = 0 : i64, tpu.core_type = #tpu.core_type<tc>, window_params = [{transform_indices = @transform_0, window_bounds = array<i64: 128, 128>}, {transform_indices = @transform_1, window_bounds = array<i64: 128, 128>}, {pipeline_mode = #tpu.pipeline_mode<synchronous>, transform_indices = @transform_2, window_bounds = array<i64: 272, 128>}, {transform_indices = @transform_3, window_bounds = array<i64: 128, 128>}]} {
    %c0 = arith.constant 0 : index
    %c0_0 = arith.constant 0 : index
    %0 = vector.load %arg1[%c0, %c0_0] : memref<128x128xf32, #tpu.memory_space<vmem>>, vector<128x128xf32>
    %c0_1 = arith.constant 0 : index
    %c0_2 = arith.constant 0 : index
    %1 = vector.load %arg3[%c0_1, %c0_2] : memref<272x128xf32, #tpu.memory_space<vmem>>, vector<128x128xf32>
    %cst = arith.constant dense<0.000000e+00> : vector<128x128xf32>
    %2 = tpu.matmul %0, %1, %cst {dimension_numbers = #tpu.dot_dimension_numbers<[1], [0], [0], [1], [0, 0, 1, 1], [], []>} : vector<128x128xf32>, vector<128x128xf32>, vector<128x128xf32> -> vector<128x128xf32>
    %c256 = arith.constant 256 : index
    %c0_3 = arith.constant 0 : index
    %3 = vector.load %arg3[%c256, %c0_3] : memref<272x128xf32, #tpu.memory_space<vmem>>, vector<1x128xf32>
    %4 = vector.broadcast %3 : vector<1x128xf32> to vector<128x128xf32>
    %5 = arith.addf %2, %4 : vector<128x128xf32>
    %cst_4 = arith.constant 0.000000e+00 : f32
    %6 = vector.broadcast %cst_4 : f32 to vector<128x128xf32>
    %7 = arith.maximumf %5, %6 : vector<128x128xf32>
    %c128 = arith.constant 128 : index
    %c0_5 = arith.constant 0 : index
    %8 = vector.load %arg3[%c128, %c0_5] : memref<272x128xf32, #tpu.memory_space<vmem>>, vector<128x128xf32>
    %cst_6 = arith.constant dense<0.000000e+00> : vector<128x128xf32>
    %9 = tpu.matmul %7, %8, %cst_6 {dimension_numbers = #tpu.dot_dimension_numbers<[1], [0], [0], [1], [0, 0, 1, 1], [], []>} : vector<128x128xf32>, vector<128x128xf32>, vector<128x128xf32> -> vector<128x128xf32>
    %c264 = arith.constant 264 : index
    %c0_7 = arith.constant 0 : index
    %10 = vector.load %arg3[%c264, %c0_7] : memref<272x128xf32, #tpu.memory_space<vmem>>, vector<1x128xf32>
    %11 = vector.broadcast %10 : vector<1x128xf32> to vector<128x128xf32>
    %12 = arith.addf %9, %11 : vector<128x128xf32>
    %c0_8 = arith.constant 0 : index
    %c0_9 = arith.constant 0 : index
    %13 = vector.load %arg2[%c0_8, %c0_9] : memref<128x128xf32, #tpu.memory_space<vmem>>, vector<128x128xf32>
    %14 = arith.addf %12, %13 : vector<128x128xf32>
    %c0_10 = arith.constant 0 : index
    %c0_11 = arith.constant 0 : index
    %15 = vector.load %arg4[%c0_10, %c0_11] : memref<128x128xf32, #tpu.memory_space<vmem>>, vector<128x128xf32>
    tpu.vector_store %arg4[%c0_10, %c0_11], %14 {strides = array<i32>} : memref<128x128xf32, #tpu.memory_space<vmem>>, vector<128x128xf32>,
    return
  }
  func.func @transform_0(%arg0: i32) -> (i32, i32) {
    %c0_i32 = arith.constant 0 : i32
    %c0_i32_0 = arith.constant 0 : i32
    return %arg0, %c0_i32 : i32, i32
  }
  func.func @transform_1(%arg0: i32) -> (i32, i32) {
    %c0_i32 = arith.constant 0 : i32
    %c0_i32_0 = arith.constant 0 : i32
    return %arg0, %c0_i32 : i32, i32
  }
  func.func @transform_2(%arg0: i32) -> (i32, i32) {
    %c0_i32 = arith.constant 0 : i32
    %c0_i32_0 = arith.constant 0 : i32
    %c0_i32_1 = arith.constant 0 : i32
    return %c0_i32, %c0_i32_0 : i32, i32
  }
  func.func @transform_3(%arg0: i32) -> (i32, i32) {
    %c0_i32 = arith.constant 0 : i32
    %c0_i32_0 = arith.constant 0 : i32
    return %arg0, %c0_i32 : i32, i32
  }
}

</mosaic_0001>

<llo_original>
// kernel: decoder_forward.1
$region0: #{decoder_forward.1}
  #allocation0 [shape = 'u32[]', space=smem, size = 0x4, offset = 0x4, fixed_abs, tag = 'smem constant byte address 0x4 - core index']
  #allocation1 [shape = 'u32[144,128]{1,0:T(1,128)}', space=vmem, size = 0x12000, scoped, tag = 'internal scratch']
  %s0 = inlined_call_operand.vmem [shape: f32[128,128], index: 0, kind: input, shape index: {}]
  %s1 = inlined_call_operand.vmem [shape: f32[128,128], index: 1, kind: input, shape index: {}]
  %s2 = inlined_call_operand.vmem [shape: f32[272,128], index: 2, kind: input, shape index: {}]
  %s3 = inlined_call_operand.vmem [shape: f32[128,128], index: 3, kind: output, shape index: {}]
  %s4 = sld [smem:[#allocation0]]
  $region22: #{decoder_forward.1} parent=0
    _
  %s6 = ssub.s32 1, %s4
  %s7 = scalar_select 0, %s6, %s4
  // Predicated region
  $region2: #{decoder_forward.1} parent=0 // pred_check
    _
  $region3: #{decoder_forward.1} parent=0 // pred_check_branch
    %9 = sbr.rel (0) target = $region5
  $region4: #{decoder_forward.1} parent=0 // pred_region
    _
  $region5: #{decoder_forward.1} parent=0 // pred_fallthru
    _
  // Predicated region
  $region6: #{decoder_forward.1} parent=0 // pred_check
    _
  $region7: #{decoder_forward.1} parent=0 // pred_check_branch
    %11 = sbr.rel (0) target = $region9
  $region8: #{decoder_forward.1} parent=0 // pred_region
    _
  $region9: #{decoder_forward.1} parent=0 // pred_fallthru
    _
  // Predicated region
  $region10: #{decoder_forward.1} parent=0 // pred_check
    _
  $region11: #{decoder_forward.1} parent=0 // pred_check_branch
    %13 = sbr.rel (0) target = $region13
  $region12: #{decoder_forward.1} parent=0 // pred_region
    _
  $region13: #{decoder_forward.1} parent=0 // pred_fallthru
    _
  %v14 = vld [vmem:[%s0] sm:$0xff]
  %v15 = vld [vmem:[%s0 + $0x8] sm:$0xff]
  %v16 = vld [vmem:[%s0 + $0x10] sm:$0xff]
  %v17 = vld [vmem:[%s0 + $0x18] sm:$0xff]
  %v18 = vld [vmem:[%s0 + $0x20] sm:$0xff]
  %v19 = vld [vmem:[%s0 + $0x28] sm:$0xff]
  %v20 = vld [vmem:[%s0 + $0x30] sm:$0xff]
  %v21 = vld [vmem:[%s0 + $0x38] sm:$0xff]
  %v22 = vld [vmem:[%s0 + $0x40] sm:$0xff]
  %v23 = vld [vmem:[%s0 + $0x48] sm:$0xff]
  %v24 = vld [vmem:[%s0 + $0x50] sm:$0xff]
  %v25 = vld [vmem:[%s0 + $0x58] sm:$0xff]
  %v26 = vld [vmem:[%s0 + $0x60] sm:$0xff]
  %v27 = vld [vmem:[%s0 + $0x68] sm:$0xff]
  %v28 = vld [vmem:[%s0 + $0x70] sm:$0xff]
  %v29 = vld [vmem:[%s0 + $0x78] sm:$0xff]
  %v30 = vld [vmem:[%s2] sm:$0xff]
  %v31 = vld [vmem:[%s2 + $0x8] sm:$0xff]
  %v32 = vld [vmem:[%s2 + $0x10] sm:$0xff]
  %v33 = vld [vmem:[%s2 + $0x18] sm:$0xff]
  %v34 = vld [vmem:[%s2 + $0x20] sm:$0xff]
  %v35 = vld [vmem:[%s2 + $0x28] sm:$0xff]
  %v36 = vld [vmem:[%s2 + $0x30] sm:$0xff]
  %v37 = vld [vmem:[%s2 + $0x38] sm:$0xff]
  %v38 = vld [vmem:[%s2 + $0x40] sm:$0xff]
  %v39 = vld [vmem:[%s2 + $0x48] sm:$0xff]
  %v40 = vld [vmem:[%s2 + $0x50] sm:$0xff]
  %v41 = vld [vmem:[%s2 + $0x58] sm:$0xff]
  %v42 = vld [vmem:[%s2 + $0x60] sm:$0xff]
  %v43 = vld [vmem:[%s2 + $0x68] sm:$0xff]
  %v44 = vld [vmem:[%s2 + $0x70] sm:$0xff]
  %v45 = vld [vmem:[%s2 + $0x78] sm:$0xff]
  %v46 = vld [vmem:[%s2 + $0x100] sm:$0x1]
  %v47 = vlaneseq
  %v48 = vshrl.u32 %v47, 7
  %v49 = vsub.s32 0, %v48
  %v50 = vrot.slane %v46, %v49
  %51 = vmatprep.subr.mxu0 0.0
  %52 = vmatpush1.msra.mxu0 %v45
  %53 = vmatprep.subr.mxu0 0.0
  %54 = vmatpush1.msra.mxu0 %v44
  %55 = vmatprep.subr.mxu0 0.0
  %56 = vmatpush1.msra.mxu0 %v43
  %57 = vmatprep.subr.mxu0 0.0
  %58 = vmatpush1.msra.mxu0 %v42
  %59 = vmatprep.subr.mxu0 0.0
  %60 = vmatpush1.msra.mxu0 %v41
  %61 = vmatprep.subr.mxu0 0.0
  %62 = vmatpush1.msra.mxu0 %v40
  %63 = vmatprep.subr.mxu0 0.0
  %64 = vmatpush1.msra.mxu0 %v39
  %65 = vmatprep.subr.mxu0 0.0
  %66 = vmatpush1.msra.mxu0 %v38
  %67 = vmatprep.subr.mxu0 0.0
  %68 = vmatpush1.msra.mxu0 %v37
  %69 = vmatprep.subr.mxu0 0.0
  %70 = vmatpush1.msra.mxu0 %v36
  %71 = vmatprep.subr.mxu0 0.0
  %72 = vmatpush1.msra.mxu0 %v35
  %73 = vmatprep.subr.mxu0 0.0
  %74 = vmatpush1.msra.mxu0 %v34
  %75 = vmatprep.subr.mxu0 0.0
  %76 = vmatpush1.msra.mxu0 %v33
  %77 = vmatprep.subr.mxu0 0.0
  %78 = vmatpush1.msra.mxu0 %v32
  %79 = vmatprep.subr.mxu0 0.0
  %80 = vmatpush1.msra.mxu0 %v31
  %81 = vmatprep.subr.mxu0 0.0
  %82 = vmatpush1.msra.mxu0 %v30
  %83 = vmatprep.subr.mxu0 0.0
  %84 = vmatpush2.msra.mxu0 0.0
  %85 = vmatprep.subr.mxu0 0.0
  %86 = vmatpush2.msra.mxu0 0.0
  %87 = vmatprep.subr.mxu0 0.0
  %88 = vmatpush2.msra.mxu0 0.0
  %89 = vmatprep.subr.mxu0 0.0
  %90 = vmatpush2.msra.mxu0 0.0
  %91 = vmatprep.subr.mxu0 0.0
  %92 = vmatpush2.msra.mxu0 0.0
  %93 = vmatprep.subr.mxu0 0.0
  %94 = vmatpush2.msra.mxu0 0.0
  %95 = vmatprep.subr.mxu0 0.0
  %96 = vmatpush2.msra.mxu0 0.0
  %97 = vmatprep.subr.mxu0 0.0
  %98 = vmatpush2.msra.mxu0 0.0
  %99 = vmatprep.subr.mxu0 0.0
  %100 = vmatpush2.msra.mxu0 0.0
  %101 = vmatprep.subr.mxu0 0.0
  %102 = vmatpush2.msra.mxu0 0.0
  %103 = vmatprep.subr.mxu0 0.0
  %104 = vmatpush2.msra.mxu0 0.0
  %105 = vmatprep.subr.mxu0 0.0
  %106 = vmatpush2.msra.mxu0 0.0
  %107 = vmatprep.subr.mxu0 0.0
  %108 = vmatpush2.msra.mxu0 0.0
  %109 = vmatprep.subr.mxu0 0.0
  %110 = vmatpush2.msra.mxu0 0.0
  %111 = vmatprep.subr.mxu0 0.0
  %112 = vmatpush2.msra.mxu0 0.0
  %113 = vmatprep.subr.mxu0 0.0
  %114 = vmatpush2.msra.mxu0 0.0
  %115 = vmatprep.mubr.f32.mxu0 0.0
  %116 = vmatmul.mubr.f32.gmra.mxu0 %v14
  %v117 = vpop.f32.mrf.mxu0
  %v118 = vadd.f32 %v50, %v117
  %v119 = vpop.f32.mrf.mxu0
  %120 = vmatprep.mubr.f32.mxu0 0.0
  %121 = vmatmul.mubr.f32.gmra.mxu0 %v15
  %v122 = vpop.f32.mrf.mxu0
  %v123 = vadd.f32 %v50, %v122
  %v124 = vpop.f32.mrf.mxu0
  %125 = vmatprep.mubr.f32.mxu0 0.0
  %126 = vmatmul.mubr.f32.gmra.mxu0 %v16
  %v127 = vpop.f32.mrf.mxu0
  %v128 = vadd.f32 %v50, %v127
  %v129 = vpop.f32.mrf.mxu0
  %130 = vmatprep.mubr.f32.mxu0 0.0
  %131 = vmatmul.mubr.f32.gmra.mxu0 %v17
  %v132 = vpop.f32.mrf.mxu0
  %v133 = vadd.f32 %v50, %v132
  %v134 = vpop.f32.mrf.mxu0
  %135 = vmatprep.mubr.f32.mxu0 0.0
  %136 = vmatmul.mubr.f32.gmra.mxu0 %v18
  %v137 = vpop.f32.mrf.mxu0
  %v138 = vadd.f32 %v50, %v137
  %v139 = vpop.f32.mrf.mxu0
  %140 = vmatprep.mubr.f32.mxu0 0.0
  %141 = vmatmul.mubr.f32.gmra.mxu0 %v19
  %v142 = vpop.f32.mrf.mxu0
  %v143 = vadd.f32 %v50, %v142
  %v144 = vpop.f32.mrf.mxu0
  %145 = vmatprep.mubr.f32.mxu0 0.0
  %146 = vmatmul.mubr.f32.gmra.mxu0 %v20
  %v147 = vpop.f32.mrf.mxu0
  %v148 = vadd.f32 %v50, %v147
  %v149 = vpop.f32.mrf.mxu0
  %150 = vmatprep.mubr.f32.mxu0 0.0
  %151 = vmatmul.mubr.f32.gmra.mxu0 %v21
  %v152 = vpop.f32.mrf.mxu0
  %v153 = vadd.f32 %v50, %v152
  %v154 = vpop.f32.mrf.mxu0
  %155 = vmatprep.mubr.f32.mxu0 0.0
  %156 = vmatmul.mubr.f32.gmra.mxu0 %v22
  %v157 = vpop.f32.mrf.mxu0
  %v158 = vadd.f32 %v50, %v157
  %v159 = vpop.f32.mrf.mxu0
  %160 = vmatprep.mubr.f32.mxu0 0.0
  %161 = vmatmul.mubr.f32.gmra.mxu0 %v23
  %v162 = vpop.f32.mrf.mxu0
  %v163 = vadd.f32 %v50, %v162
  %v164 = vpop.f32.mrf.mxu0
  %165 = vmatprep.mubr.f32.mxu0 0.0
  %166 = vmatmul.mubr.f32.gmra.mxu0 %v24
  %v167 = vpop.f32.mrf.mxu0
  %v168 = vadd.f32 %v50, %v167
  %v169 = vpop.f32.mrf.mxu0
  %170 = vmatprep.mubr.f32.mxu0 0.0
  %171 = vmatmul.mubr.f32.gmra.mxu0 %v25
  %v172 = vpop.f32.mrf.mxu0
  %v173 = vadd.f32 %v50, %v172
  %v174 = vpop.f32.mrf.mxu0
  %175 = vmatprep.mubr.f32.mxu0 0.0
  %176 = vmatmul.mubr.f32.gmra.mxu0 %v26
  %v177 = vpop.f32.mrf.mxu0
  %v178 = vadd.f32 %v50, %v177
  %v179 = vpop.f32.mrf.mxu0
  %180 = vmatprep.mubr.f32.mxu0 0.0
  %181 = vmatmul.mubr.f32.gmra.mxu0 %v27
  %v182 = vpop.f32.mrf.mxu0
  %v183 = vadd.f32 %v50, %v182
  %v184 = vpop.f32.mrf.mxu0
  %185 = vmatprep.mubr.f32.mxu0 0.0
  %186 = vmatmul.mubr.f32.gmra.mxu0 %v28
  %v187 = vpop.f32.mrf.mxu0
  %v188 = vadd.f32 %v50, %v187
  %v189 = vpop.f32.mrf.mxu0
  %190 = vmatprep.mubr.f32.mxu0 0.0
  %191 = vmatmul.mubr.f32.gmra.mxu0 %v29
  %v192 = vpop.f32.mrf.mxu0
  %v193 = vadd.f32 %v50, %v192
  %v194 = vpop.f32.mrf.mxu0
  %195 = vdwg.mxu0
  %v196 = vmax.f32 %v118, 0.0
  %v197 = vmax.f32 %v123, 0.0
  %v198 = vmax.f32 %v128, 0.0
  %v199 = vmax.f32 %v133, 0.0
  %v200 = vmax.f32 %v138, 0.0
  %v201 = vmax.f32 %v143, 0.0
  %v202 = vmax.f32 %v148, 0.0
  %v203 = vmax.f32 %v153, 0.0
  %v204 = vmax.f32 %v158, 0.0
  %v205 = vmax.f32 %v163, 0.0
  %v206 = vmax.f32 %v168, 0.0
  %v207 = vmax.f32 %v173, 0.0
  %v208 = vmax.f32 %v178, 0.0
  %v209 = vmax.f32 %v183, 0.0
  %v210 = vmax.f32 %v188, 0.0
  %v211 = vmax.f32 %v193, 0.0
  %v212 = vld [vmem:[%s2 + $0x80] sm:$0xff]
  %v213 = vld [vmem:[%s2 + $0x88] sm:$0xff]
  %v214 = vld [vmem:[%s2 + $0x90] sm:$0xff]
  %v215 = vld [vmem:[%s2 + $0x98] sm:$0xff]
  %v216 = vld [vmem:[%s2 + $0xa0] sm:$0xff]
  %v217 = vld [vmem:[%s2 + $0xa8] sm:$0xff]
  %v218 = vld [vmem:[%s2 + $0xb0] sm:$0xff]
  %v219 = vld [vmem:[%s2 + $0xb8] sm:$0xff]
  %v220 = vld [vmem:[%s2 + $0xc0] sm:$0xff]
  %v221 = vld [vmem:[%s2 + $0xc8] sm:$0xff]
  %v222 = vld [vmem:[%s2 + $0xd0] sm:$0xff]
  %v223 = vld [vmem:[%s2 + $0xd8] sm:$0xff]
  %v224 = vld [vmem:[%s2 + $0xe0] sm:$0xff]
  %v225 = vld [vmem:[%s2 + $0xe8] sm:$0xff]
  %v226 = vld [vmem:[%s2 + $0xf0] sm:$0xff]
  %v227 = vld [vmem:[%s2 + $0xf8] sm:$0xff]
  %v228 = vld [vmem:[%s2 + $0x108] sm:$0x1]
  %v229 = vlaneseq
  %v230 = vshrl.u32 %v229, 7
  %v231 = vsub.s32 0, %v230
  %v232 = vrot.slane %v228, %v231
  %233 = vmatprep.subr.mxu0 0.0
  %234 = vmatpush1.msra.mxu0 %v227
  %235 = vmatprep.subr.mxu0 0.0
  %236 = vmatpush1.msra.mxu0 %v226
  %237 = vmatprep.subr.mxu0 0.0
  %238 = vmatpush1.msra.mxu0 %v225
  %239 = vmatprep.subr.mxu0 0.0
  %240 = vmatpush1.msra.mxu0 %v224
  %241 = vmatprep.subr.mxu0 0.0
  %242 = vmatpush1.msra.mxu0 %v223
  %243 = vmatprep.subr.mxu0 0.0
  %244 = vmatpush1.msra.mxu0 %v222
  %245 = vmatprep.subr.mxu0 0.0
  %246 = vmatpush1.msra.mxu0 %v221
  %247 = vmatprep.subr.mxu0 0.0
  %248 = vmatpush1.msra.mxu0 %v220
  %249 = vmatprep.subr.mxu0 0.0
  %250 = vmatpush1.msra.mxu0 %v219
  %251 = vmatprep.subr.mxu0 0.0
  %252 = vmatpush1.msra.mxu0 %v218
  %253 = vmatprep.subr.mxu0 0.0
  %254 = vmatpush1.msra.mxu0 %v217
  %255 = vmatprep.subr.mxu0 0.0
  %256 = vmatpush1.msra.mxu0 %v216
  %257 = vmatprep.subr.mxu0 0.0
  %258 = vmatpush1.msra.mxu0 %v215
  %259 = vmatprep.subr.mxu0 0.0
  %260 = vmatpush1.msra.mxu0 %v214
  %261 = vmatprep.subr.mxu0 0.0
  %262 = vmatpush1.msra.mxu0 %v213
  %263 = vmatprep.subr.mxu0 0.0
  %264 = vmatpush1.msra.mxu0 %v212
  %265 = vmatprep.subr.mxu0 0.0
  %266 = vmatpush2.msra.mxu0 0.0
  %267 = vmatprep.subr.mxu0 0.0
  %268 = vmatpush2.msra.mxu0 0.0
  %269 = vmatprep.subr.mxu0 0.0
  %270 = vmatpush2.msra.mxu0 0.0
  %271 = vmatprep.subr.mxu0 0.0
  %272 = vmatpush2.msra.mxu0 0.0
  %273 = vmatprep.subr.mxu0 0.0
  %274 = vmatpush2.msra.mxu0 0.0
  %275 = vmatprep.subr.mxu0 0.0
  %276 = vmatpush2.msra.mxu0 0.0
  %277 = vmatprep.subr.mxu0 0.0
  %278 = vmatpush2.msra.mxu0 0.0
  %279 = vmatprep.subr.mxu0 0.0
  %280 = vmatpush2.msra.mxu0 0.0
  %281 = vmatprep.subr.mxu0 0.0
  %282 = vmatpush2.msra.mxu0 0.0
  %283 = vmatprep.subr.mxu0 0.0
  %284 = vmatpush2.msra.mxu0 0.0
  %285 = vmatprep.subr.mxu0 0.0
  %286 = vmatpush2.msra.mxu0 0.0
  %287 = vmatprep.subr.mxu0 0.0
  %288 = vmatpush2.msra.mxu0 0.0
  %289 = vmatprep.subr.mxu0 0.0
  %290 = vmatpush2.msra.mxu0 0.0
  %291 = vmatprep.subr.mxu0 0.0
  %292 = vmatpush2.msra.mxu0 0.0
  %293 = vmatprep.subr.mxu0 0.0
  %294 = vmatpush2.msra.mxu0 0.0
  %295 = vmatprep.subr.mxu0 0.0
  %296 = vmatpush2.msra.mxu0 0.0
  %297 = vmatprep.mubr.f32.mxu0 0.0
  %298 = vmatmul.mubr.f32.gmra.mxu0 %v196
  %v299 = vpop.f32.mrf.mxu0
  %v300 = vadd.f32 %v232, %v299
  %v301 = vpop.f32.mrf.mxu0
  %302 = vmatprep.mubr.f32.mxu0 0.0
  %303 = vmatmul.mubr.f32.gmra.mxu0 %v197
  %v304 = vpop.f32.mrf.mxu0
  %v305 = vadd.f32 %v232, %v304
  %v306 = vpop.f32.mrf.mxu0
  %307 = vmatprep.mubr.f32.mxu0 0.0
  %308 = vmatmul.mubr.f32.gmra.mxu0 %v198
  %v309 = vpop.f32.mrf.mxu0
  %v310 = vadd.f32 %v232, %v309
  %v311 = vpop.f32.mrf.mxu0
  %312 = vmatprep.mubr.f32.mxu0 0.0
  %313 = vmatmul.mubr.f32.gmra.mxu0 %v199
  %v314 = vpop.f32.mrf.mxu0
  %v315 = vadd.f32 %v232, %v314
  %v316 = vpop.f32.mrf.mxu0
  %317 = vmatprep.mubr.f32.mxu0 0.0
  %318 = vmatmul.mubr.f32.gmra.mxu0 %v200
  %v319 = vpop.f32.mrf.mxu0
  %v320 = vadd.f32 %v232, %v319
  %v321 = vpop.f32.mrf.mxu0
  %322 = vmatprep.mubr.f32.mxu0 0.0
  %323 = vmatmul.mubr.f32.gmra.mxu0 %v201
  %v324 = vpop.f32.mrf.mxu0
  %v325 = vadd.f32 %v232, %v324
  %v326 = vpop.f32.mrf.mxu0
  %327 = vmatprep.mubr.f32.mxu0 0.0
  %328 = vmatmul.mubr.f32.gmra.mxu0 %v202
  %v329 = vpop.f32.mrf.mxu0
  %v330 = vadd.f32 %v232, %v329
  %v331 = vpop.f32.mrf.mxu0
  %332 = vmatprep.mubr.f32.mxu0 0.0
  %333 = vmatmul.mubr.f32.gmra.mxu0 %v203
  %v334 = vpop.f32.mrf.mxu0
  %v335 = vadd.f32 %v232, %v334
  %v336 = vpop.f32.mrf.mxu0
  %337 = vmatprep.mubr.f32.mxu0 0.0
  %338 = vmatmul.mubr.f32.gmra.mxu0 %v204
  %v339 = vpop.f32.mrf.mxu0
  %v340 = vadd.f32 %v232, %v339
  %v341 = vpop.f32.mrf.mxu0
  %342 = vmatprep.mubr.f32.mxu0 0.0
  %343 = vmatmul.mubr.f32.gmra.mxu0 %v205
  %v344 = vpop.f32.mrf.mxu0
  %v345 = vadd.f32 %v232, %v344
  %v346 = vpop.f32.mrf.mxu0
  %347 = vmatprep.mubr.f32.mxu0 0.0
  %348 = vmatmul.mubr.f32.gmra.mxu0 %v206
  %v349 = vpop.f32.mrf.mxu0
  %v350 = vadd.f32 %v232, %v349
  %v351 = vpop.f32.mrf.mxu0
  %352 = vmatprep.mubr.f32.mxu0 0.0
  %353 = vmatmul.mubr.f32.gmra.mxu0 %v207
  %v354 = vpop.f32.mrf.mxu0
  %v355 = vadd.f32 %v232, %v354
  %v356 = vpop.f32.mrf.mxu0
  %357 = vmatprep.mubr.f32.mxu0 0.0
  %358 = vmatmul.mubr.f32.gmra.mxu0 %v208
  %v359 = vpop.f32.mrf.mxu0
  %v360 = vadd.f32 %v232, %v359
  %v361 = vpop.f32.mrf.mxu0
  %362 = vmatprep.mubr.f32.mxu0 0.0
  %363 = vmatmul.mubr.f32.gmra.mxu0 %v209
  %v364 = vpop.f32.mrf.mxu0
  %v365 = vadd.f32 %v232, %v364
  %v366 = vpop.f32.mrf.mxu0
  %367 = vmatprep.mubr.f32.mxu0 0.0
  %368 = vmatmul.mubr.f32.gmra.mxu0 %v210
  %v369 = vpop.f32.mrf.mxu0
  %v370 = vadd.f32 %v232, %v369
  %v371 = vpop.f32.mrf.mxu0
  %372 = vmatprep.mubr.f32.mxu0 0.0
  %373 = vmatmul.mubr.f32.gmra.mxu0 %v211
  %v374 = vpop.f32.mrf.mxu0
  %v375 = vadd.f32 %v232, %v374
  %v376 = vpop.f32.mrf.mxu0
  %377 = vdwg.mxu0
  %v378 = vld [vmem:[%s1] sm:$0xff]
  %v379 = vld [vmem:[%s1 + $0x8] sm:$0xff]
  %v380 = vld [vmem:[%s1 + $0x10] sm:$0xff]
  %v381 = vld [vmem:[%s1 + $0x18] sm:$0xff]
  %v382 = vld [vmem:[%s1 + $0x20] sm:$0xff]
  %v383 = vld [vmem:[%s1 + $0x28] sm:$0xff]
  %v384 = vld [vmem:[%s1 + $0x30] sm:$0xff]
  %v385 = vld [vmem:[%s1 + $0x38] sm:$0xff]
  %v386 = vld [vmem:[%s1 + $0x40] sm:$0xff]
  %v387 = vld [vmem:[%s1 + $0x48] sm:$0xff]
  %v388 = vld [vmem:[%s1 + $0x50] sm:$0xff]
  %v389 = vld [vmem:[%s1 + $0x58] sm:$0xff]
  %v390 = vld [vmem:[%s1 + $0x60] sm:$0xff]
  %v391 = vld [vmem:[%s1 + $0x68] sm:$0xff]
  %v392 = vld [vmem:[%s1 + $0x70] sm:$0xff]
  %v393 = vld [vmem:[%s1 + $0x78] sm:$0xff]
  %v394 = vadd.f32 %v300, %v378
  %v395 = vadd.f32 %v305, %v379
  %v396 = vadd.f32 %v310, %v380
  %v397 = vadd.f32 %v315, %v381
  %v398 = vadd.f32 %v320, %v382
  %v399 = vadd.f32 %v325, %v383
  %v400 = vadd.f32 %v330, %v384
  %v401 = vadd.f32 %v335, %v385
  %v402 = vadd.f32 %v340, %v386
  %v403 = vadd.f32 %v345, %v387
  %v404 = vadd.f32 %v350, %v388
  %v405 = vadd.f32 %v355, %v389
  %v406 = vadd.f32 %v360, %v390
  %v407 = vadd.f32 %v365, %v391
  %v408 = vadd.f32 %v370, %v392
  %v409 = vadd.f32 %v375, %v393
  %410 = vst [vmem:[%s3] sm:$0xff] %v394
  %411 = vst [vmem:[%s3 + $0x8] sm:$0xff] %v395
  %412 = vst [vmem:[%s3 + $0x10] sm:$0xff] %v396
  %413 = vst [vmem:[%s3 + $0x18] sm:$0xff] %v397
  %414 = vst [vmem:[%s3 + $0x20] sm:$0xff] %v398
  %415 = vst [vmem:[%s3 + $0x28] sm:$0xff] %v399
  %416 = vst [vmem:[%s3 + $0x30] sm:$0xff] %v400
  %417 = vst [vmem:[%s3 + $0x38] sm:$0xff] %v401
  %418 = vst [vmem:[%s3 + $0x40] sm:$0xff] %v402
  %419 = vst [vmem:[%s3 + $0x48] sm:$0xff] %v403
  %420 = vst [vmem:[%s3 + $0x50] sm:$0xff] %v404
  %421 = vst [vmem:[%s3 + $0x58] sm:$0xff] %v405
  %422 = vst [vmem:[%s3 + $0x60] sm:$0xff] %v406
  %423 = vst [vmem:[%s3 + $0x68] sm:$0xff] %v407
  %424 = vst [vmem:[%s3 + $0x70] sm:$0xff] %v408
  %425 = vst [vmem:[%s3 + $0x78] sm:$0xff] %v409
  // Predicated region
  $region14: #{decoder_forward.1} parent=0 // pred_check
    _
  $region15: #{decoder_forward.1} parent=0 // pred_check_branch
    %427 = sbr.rel (0) target = $region17
  $region16: #{decoder_forward.1} parent=0 // pred_region
    _
  $region17: #{decoder_forward.1} parent=0 // pred_fallthru
    _
  // Predicated region
  $region18: #{decoder_forward.1} parent=0 // pred_check
    _
  $region19: #{decoder_forward.1} parent=0 // pred_check_branch
    %429 = sbr.rel (0) target = $region21
  $region20: #{decoder_forward.1} parent=0 // pred_region
    _
  $region21: #{decoder_forward.1} parent=0 // pred_fallthru
    _

</llo_original>
